<compile_context>
chip_gen: v7x
topology: tpu7x:2x2x1
jax: 0.10.0
libtpu: 0.0.40
codegen_flags: <defaults>
</compile_context>

<pallas_src>
import functools

import jax
import jax.numpy as jnp
from jax import lax
from jax.experimental import pallas as pl
from jax.experimental.pallas import tpu as pltpu


def _round_up(x: int, m: int) -> int:
    return ((x + m - 1) // m) * m


def _sep_loss_kernel(rows_ref, colsT_ref, rowmax_ref, *, n, tile, has_pad,
                     mm_dtype):
    i = pl.program_id(0)  # row-tile index (parallel)
    j = pl.program_id(1)  # col-tile index (reduction, innermost)

    @pl.when(j == 0)
    def _init():
        rowmax_ref[...] = jnp.full(rowmax_ref.shape, -jnp.inf,
                                   dtype=rowmax_ref.dtype)

    # MXU Gram tile: (tile, D) @ (D, tile) with f32 accumulation.
    a = rows_ref[...].astype(mm_dtype)
    b = colsT_ref[...].astype(mm_dtype)
    s = jnp.dot(a, b, preferred_element_type=jnp.float32)  # (tile, tile) f32

    # Global row / column indices for this tile (2D iota, TPU-safe).
    row_ids = i * tile + lax.broadcasted_iota(jnp.int32, (tile, tile), 0)
    col_ids = j * tile + lax.broadcasted_iota(jnp.int32, (tile, tile), 1)

    # -2*I correction as a single select (only diagonal tiles have hits).
    s = jnp.where(row_ids == col_ids, s - 2.0, s)

    if has_pad:
        # Padded (zero) columns must never win the row max.
        s = jnp.where(col_ids < n, s, -jnp.inf)

    # Running row-max across column tiles, accumulated in the output block.
    rowmax_ref[...] = jnp.maximum(rowmax_ref[...],
                                  jnp.max(s, axis=1, keepdims=True))


def separation_loss(protos: jax.Array, *, tile: int = 256,
                    matmul_dtype=None) -> jax.Array:
    """protos: (N_prototypes, Embedding_dim). Returns a scalar float32 loss.

    matmul_dtype: dtype fed to the MXU (e.g. jnp.bfloat16 for higher matmul
    throughput with f32 accumulation). Defaults to the input dtype (f32
    reference semantics for f32 inputs).
    """
    n, d = protos.shape
    if matmul_dtype is None:
        matmul_dtype = protos.dtype

    # Tile selection:
    #  - one tile covering all prototypes when N <= tile (rounded to sublane 8)
    #  - otherwise a multiple of 128 (lane constraint of the (D, T) column
    #    block; 256 matches v6e/v7x's 256x256 MXU).
    if n <= tile:
        t = _round_up(n, 8)
    else:
        t = max(128, _round_up(min(tile, n), 128))
    n_pad = _round_up(n, t)
    has_pad = n_pad != n

    protos_p = jnp.pad(protos, ((0, n_pad - n), (0, 0))) if has_pad else protos
    protos_t = protos_p.T  # (D, N_pad): canonical RHS layout, no in-kernel transpose

    grid_rows = n_pad // t
    grid = (grid_rows, grid_rows)

    kernel = functools.partial(_sep_loss_kernel, n=n, tile=t,
                               has_pad=has_pad, mm_dtype=matmul_dtype)

    itemsize = protos.dtype.itemsize
    # Double-buffered row + column tiles, Gram tile + VPU temporaries, row-max block.
    footprint = 2 * 2 * t * d * itemsize + 8 * t * t * 4 + 2 * t * 4
    vmem_limit = int(min(64 * 1024 * 1024, max(8 * 1024 * 1024, 2 * footprint)))

    row_max = pl.pallas_call(
        kernel,
        out_shape=jax.ShapeDtypeStruct((n_pad, 1), jnp.float32),
        grid_spec=pltpu.PrefetchScalarGridSpec(
            num_scalar_prefetch=0,
            grid=grid,
            in_specs=[
                pl.BlockSpec((t, d), lambda i, j: (i, 0)),  # row tile of protos
                pl.BlockSpec((d, t), lambda i, j: (0, j)),  # col tile of protos.T
            ],
            out_specs=pl.BlockSpec((t, 1), lambda i, j: (i, 0)),
        ),
        compiler_params=pltpu.CompilerParams(
            dimension_semantics=("parallel", "arbitrary"),
            vmem_limit_bytes=vmem_limit,
        ),
        cost_estimate=pl.CostEstimate(
            flops=2 * n_pad * n_pad * d,
            transcendentals=0,
            bytes_accessed=(grid_rows + 1) * n_pad * d * itemsize + n_pad * 4,
        ),
    )(protos_p, protos_t)

    # Padded rows are dropped here (static slice); mean divides by the true N.
    return jnp.mean(row_max[:n, 0])


def separation_loss_ref(protos: jax.Array) -> jax.Array:
    """Pure-JAX reference mirroring the PyTorch forward (f32-accurate matmul)."""
    n = protos.shape[0]
    gram = jnp.dot(protos, protos.T, precision=lax.Precision.HIGHEST)
    m = gram - 2.0 * jnp.eye(n, dtype=protos.dtype)
    return jnp.mean(jnp.max(m, axis=1))


if __name__ == "__main__":
    key = jax.random.PRNGKey(0)

    def unit(x):
        return x / jnp.linalg.norm(x, axis=-1, keepdims=True)

    # Small example matching the module: N_prototypes=8, Embedding_dim=32
    # (hyperspherical prototypes are unit-norm).
    n_protos, emb_dim = 8, 32
    protos = unit(jax.random.normal(key, (n_protos, emb_dim), dtype=jnp.float32))
    ref = separation_loss_ref(protos)

    # f32 MXU path.
    loss = jax.block_until_ready(separation_loss(protos))
    assert jnp.allclose(loss, ref, atol=5e-3, rtol=1e-3), (loss, ref)

    # Fast path: bf16 MXU feed with f32 accumulation (looser tolerance).
    loss_bf16 = jax.block_until_ready(
        separation_loss(protos, matmul_dtype=jnp.bfloat16))
    assert jnp.allclose(loss_bf16, ref, atol=5e-2, rtol=2e-2), (loss_bf16, ref)

    # Non-multiple-of-8 N exercises padded-column masking + host row slicing.
    protos2 = unit(jax.random.normal(jax.random.PRNGKey(1), (13, 32),
                                     dtype=jnp.float32))
    loss2 = jax.block_until_ready(separation_loss(protos2))
    ref2 = separation_loss_ref(protos2)
    assert jnp.allclose(loss2, ref2, atol=5e-3, rtol=1e-3), (loss2, ref2)

    # Multi-tile case (2x2 grid with edge padding) exercises the running
    # row-max reduction across column tiles and the diagonal-tile select.
    protos3 = unit(jax.random.normal(jax.random.PRNGKey(2), (300, 32),
                                     dtype=jnp.float32))
    loss3 = jax.block_until_ready(separation_loss(protos3))
    ref3 = separation_loss_ref(protos3)
    assert jnp.allclose(loss3, ref3, atol=5e-3, rtol=1e-3), (loss3, ref3)

    print("KERNEL_OK")
</pallas_src>

<mosaic_0001>
module attributes {stable_mosaic.version = 11 : i64} {
  func.func @_sep_loss_kernel(%arg0: i32, %arg1: i32, %arg2: memref<8x32xf32, #tpu.memory_space<vmem>>, %arg3: memref<32x8xf32, #tpu.memory_space<vmem>>, %arg4: memref<8x1xf32, #tpu.memory_space<vmem>>) attributes {dimension_semantics = [#tpu.dimension_semantics<parallel>, #tpu.dimension_semantics<arbitrary>], iteration_bounds = array<i64: 1, 1>, scalar_prefetch = 0 : i64, scratch_operands = 0 : i64, tpu.core_type = #tpu.core_type<tc>, window_params = [{transform_indices = @transform_0, window_bounds = array<i64: 8, 32>}, {transform_indices = @transform_1, window_bounds = array<i64: 32, 8>}, {transform_indices = @transform_2, window_bounds = array<i64: 8, 1>}]} {
    %c0_i32 = arith.constant 0 : i32
    %0 = arith.cmpi eq, %arg1, %c0_i32 : i32
    %1 = arith.extui %0 : i1 to i32
    %c0_i32_0 = arith.constant 0 : i32
    %2 = arith.cmpi ne, %1, %c0_i32_0 : i32
    scf.if %2 {
      %cst_11 = arith.constant 0xFF800000 : f32
      %23 = vector.broadcast %cst_11 : f32 to vector<8x1xf32>
      %c0_12 = arith.constant 0 : index
      %c0_13 = arith.constant 0 : index
      %24 = vector.load %arg4[%c0_12, %c0_13] : memref<8x1xf32, #tpu.memory_space<vmem>>, vector<8x1xf32>
      tpu.vector_store %arg4[%c0_12, %c0_13], %23 {strides = array<i32>} : memref<8x1xf32, #tpu.memory_space<vmem>>, vector<8x1xf32>,
    } else {
    }
    %c0 = arith.constant 0 : index
    %c0_1 = arith.constant 0 : index
    %3 = vector.load %arg2[%c0, %c0_1] : memref<8x32xf32, #tpu.memory_space<vmem>>, vector<8x32xf32>
    %c0_2 = arith.constant 0 : index
    %c0_3 = arith.constant 0 : index
    %4 = vector.load %arg3[%c0_2, %c0_3] : memref<32x8xf32, #tpu.memory_space<vmem>>, vector<32x8xf32>
    %cst = arith.constant dense<0.000000e+00> : vector<8x8xf32>
    %5 = tpu.matmul %3, %4, %cst {dimension_numbers = #tpu.dot_dimension_numbers<[1], [0], [0], [1], [0, 0, 1, 1], [], []>} : vector<8x32xf32>, vector<32x8xf32>, vector<8x8xf32> -> vector<8x8xf32>
    %c8_i32 = arith.constant 8 : i32
    %6 = arith.muli %arg0, %c8_i32 : i32
    %7 = tpu.iota {dimensions = array<i32: 0>} : vector<8x8xi32>
    %8 = vector.broadcast %6 : i32 to vector<8x8xi32>
    %9 = arith.addi %8, %7 : vector<8x8xi32>
    %c8_i32_4 = arith.constant 8 : i32
    %10 = arith.muli %arg1, %c8_i32_4 : i32
    %11 = tpu.iota {dimensions = array<i32: 1>} : vector<8x8xi32>
    %12 = vector.broadcast %10 : i32 to vector<8x8xi32>
    %13 = arith.addi %12, %11 : vector<8x8xi32>
    %14 = arith.cmpi eq, %9, %13 : vector<8x8xi32>
    %cst_5 = arith.constant 2.000000e+00 : f32
    %15 = vector.broadcast %cst_5 : f32 to vector<8x8xf32>
    %16 = arith.subf %5, %15 : vector<8x8xf32>
    %17 = arith.select %14, %16, %5 : vector<8x8xi1>, vector<8x8xf32>
    %c0_6 = arith.constant 0 : index
    %c0_7 = arith.constant 0 : index
    %18 = vector.load %arg4[%c0_6, %c0_7] : memref<8x1xf32, #tpu.memory_space<vmem>>, vector<8x1xf32>
    %cst_8 = arith.constant dense<0xFF800000> : vector<8xf32>
    %19 = vector.multi_reduction <maximumf>, %17, %cst_8 [1] : vector<8x8xf32> to vector<8xf32>
    %20 = vector.shape_cast %19 : vector<8xf32> to vector<8x1xf32>
    %21 = arith.maximumf %18, %20 : vector<8x1xf32>
    %c0_9 = arith.constant 0 : index
    %c0_10 = arith.constant 0 : index
    %22 = vector.load %arg4[%c0_9, %c0_10] : memref<8x1xf32, #tpu.memory_space<vmem>>, vector<8x1xf32>
    tpu.vector_store %arg4[%c0_9, %c0_10], %21 {strides = array<i32>} : memref<8x1xf32, #tpu.memory_space<vmem>>, vector<8x1xf32>,
    return
  }
  func.func @transform_0(%arg0: i32, %arg1: i32) -> (i32, i32) {
    %c0_i32 = arith.constant 0 : i32
    %c0_i32_0 = arith.constant 0 : i32
    return %arg0, %c0_i32 : i32, i32
  }
  func.func @transform_1(%arg0: i32, %arg1: i32) -> (i32, i32) {
    %c0_i32 = arith.constant 0 : i32
    %c0_i32_0 = arith.constant 0 : i32
    return %c0_i32, %arg1 : i32, i32
  }
  func.func @transform_2(%arg0: i32, %arg1: i32) -> (i32, i32) {
    %c0_i32 = arith.constant 0 : i32
    %c0_i32_0 = arith.constant 0 : i32
    return %arg0, %c0_i32 : i32, i32
  }
}

</mosaic_0001>

<llo_original>
// kernel: tpu_custom_call.1
$region0: #{tpu_custom_call.1}
  #allocation0 [shape = 'u32[]', space=smem, size = 0x4, offset = 0x4, fixed_abs, tag = 'smem constant byte address 0x4 - core index']
  #allocation1 [shape = 'u32[144,128]{1,0:T(1,128)}', space=vmem, size = 0x12000, scoped, tag = 'internal scratch']
  %s0 = inlined_call_operand.vmem [shape: f32[8,32], index: 0, kind: input, shape index: {}]
  %s1 = inlined_call_operand.vmem [shape: f32[32,8], index: 1, kind: input, shape index: {}]
  %s2 = inlined_call_operand.vmem [shape: f32[8,1], index: 2, kind: output, shape index: {}]
  %s3 = sld [smem:[#allocation0]]
  $region22: #{tpu_custom_call.1} parent=0
    _
  %s5 = ssub.s32 1, %s3
  %s6 = scalar_select 0, %s5, %s3
  // Predicated region
  $region2: #{tpu_custom_call.1} parent=0 // pred_check
    _
  $region3: #{tpu_custom_call.1} parent=0 // pred_check_branch
    %8 = sbr.rel (0) target = $region5
  $region4: #{tpu_custom_call.1} parent=0 // pred_region
    _
  $region5: #{tpu_custom_call.1} parent=0 // pred_fallthru
    _
  // Predicated region
  $region6: #{tpu_custom_call.1} parent=0 // pred_check
    _
  $region7: #{tpu_custom_call.1} parent=0 // pred_check_branch
    %10 = sbr.rel (0) target = $region9
  $region8: #{tpu_custom_call.1} parent=0 // pred_region
    _
  $region9: #{tpu_custom_call.1} parent=0 // pred_fallthru
    _
  %p11 = scmp.eq.s32.totalorder 0, 0
  // Predicated region
  $region10: #{tpu_custom_call.1} parent=0 // pred_check
    %p12 = pneg %p11
  $region11: #{tpu_custom_call.1} parent=0 // pred_check_branch
    %14 = sbr.rel (%p12) target = $region13
  $region12: #{tpu_custom_call.1} parent=0 // pred_region
    %vm15 = vcmask 7168
    %16 = vst.msk [vmem:[%s2] sm:$0xff] %vm15, -inf
  $region13: #{tpu_custom_call.1} parent=0 // pred_fallthru
    _
  %v17 = vld [vmem:[%s0] sm:$0xff]
  %v18 = vld [vmem:[%s1] sm:$0xff]
  %v19 = vld [vmem:[%s1 + $0x8] sm:$0xff]
  %v20 = vld [vmem:[%s1 + $0x10] sm:$0xff]
  %v21 = vld [vmem:[%s1 + $0x18] sm:$0xff]
  %vm22 = vcmask 261120
  %v24 = vsel %vm22, %v17, 0
  %26 = vmatprep.subr.mxu0 0.0
  %27 = vmatpush1.msra.mxu0 %v18
  %28 = vmatprep.subr.mxu0 0.0
  %29 = vmatpush1.msra.mxu0 %v19
  %30 = vmatprep.subr.mxu0 0.0
  %31 = vmatpush1.msra.mxu0 %v20
  %32 = vmatprep.subr.mxu0 0.0
  %33 = vmatpush1.msra.mxu0 %v21
  %34 = vmatprep.subr.mxu0 0.0
  %35 = vmatpush1.msra.mxu0 0.0
  %36 = vmatprep.subr.mxu0 0.0
  %37 = vmatpush1.msra.mxu0 0.0
  %38 = vmatprep.subr.mxu0 0.0
  %39 = vmatpush1.msra.mxu0 0.0
  %40 = vmatprep.subr.mxu0 0.0
  %41 = vmatpush1.msra.mxu0 0.0
  %42 = vmatprep.subr.mxu0 0.0
  %43 = vmatpush1.msra.mxu0 0.0
  %44 = vmatprep.subr.mxu0 0.0
  %45 = vmatpush1.msra.mxu0 0.0
  %46 = vmatprep.subr.mxu0 0.0
  %47 = vmatpush1.msra.mxu0 0.0
  %48 = vmatprep.subr.mxu0 0.0
  %49 = vmatpush1.msra.mxu0 0.0
  %50 = vmatprep.subr.mxu0 0.0
  %51 = vmatpush1.msra.mxu0 0.0
  %52 = vmatprep.subr.mxu0 0.0
  %53 = vmatpush1.msra.mxu0 0.0
  %54 = vmatprep.subr.mxu0 0.0
  %55 = vmatpush1.msra.mxu0 0.0
  %56 = vmatprep.subr.mxu0 0.0
  %57 = vmatpush1.msra.mxu0 0.0
  %58 = vmatprep.subr.mxu0 0.0
  %59 = vmatpush1.msra.mxu0 0.0
  %60 = vmatprep.subr.mxu0 0.0
  %61 = vmatpush1.msra.mxu0 0.0
  %62 = vmatprep.subr.mxu0 0.0
  %63 = vmatpush1.msra.mxu0 0.0
  %64 = vmatprep.subr.mxu0 0.0
  %65 = vmatpush1.msra.mxu0 0.0
  %66 = vmatprep.subr.mxu0 0.0
  %67 = vmatpush1.msra.mxu0 0.0
  %68 = vmatprep.subr.mxu0 0.0
  %69 = vmatpush1.msra.mxu0 0.0
  %70 = vmatprep.subr.mxu0 0.0
  %71 = vmatpush1.msra.mxu0 0.0
  %72 = vmatprep.subr.mxu0 0.0
  %73 = vmatpush1.msra.mxu0 0.0
  %74 = vmatprep.subr.mxu0 0.0
  %75 = vmatpush1.msra.mxu0 0.0
  %76 = vmatprep.subr.mxu0 0.0
  %77 = vmatpush1.msra.mxu0 0.0
  %78 = vmatprep.subr.mxu0 0.0
  %79 = vmatpush1.msra.mxu0 0.0
  %80 = vmatprep.subr.mxu0 0.0
  %81 = vmatpush1.msra.mxu0 0.0
  %82 = vmatprep.subr.mxu0 0.0
  %83 = vmatpush1.msra.mxu0 0.0
  %84 = vmatprep.subr.mxu0 0.0
  %85 = vmatpush1.msra.mxu0 0.0
  %86 = vmatprep.subr.mxu0 0.0
  %87 = vmatpush1.msra.mxu0 0.0
  %88 = vmatprep.subr.mxu0 0.0
  %89 = vmatpush1.msra.mxu0 0.0
  %90 = vmatprep.mubr.f32.mxu0 0.0
  %91 = vmatmul.mubr.f32.gmra.mrb[0].mxu0 %v24
  %v92 = vpop.f32.mrb[0].mxu0
  %v93 = vadd.f32 0.0, %v92
  %v94 = vpop.f32.mrb[0].mxu0
  %95 = vdwg.mxu0
  %s96 = smul.u32 0, 8
  %v97 = vlaneseq
  %v98 = vshrl.u32 %v97, 7
  %v99 = vstv %s96
  %v100 = vadd.s32 %v99, %v98
  %s101 = smul.u32 0, 8
  %v102 = vlaneseq
  %v103 = vand.u32 %v102, 127
  %v104 = vstv %s101
  %v105 = vadd.s32 %v104, %v103
  %vm106 = vcmp.eq.s32.totalorder %v100, %v105
  %v107 = vsub.f32 %v93, 2.0
  %v108 = vsel %vm106, %v107, %v93
  %v109 = vld [vmem:[%s2] sm:$0xff]
  %vm110 = vcmask 64512
  %v111 = vsel %vm110, %v108, -inf
  %112 = vmax.xlane.f32.xlu0 %v111
  %v113 = vpop.xlane.xlu0 %112
  %v114 = vmax.f32 %v109, %v113
  %vm115 = vcmask 7168
  %116 = vst.msk [vmem:[%s2] sm:$0xff] %vm115, %v114
  // Predicated region
  $region14: #{tpu_custom_call.1} parent=0 // pred_check
    _
  $region15: #{tpu_custom_call.1} parent=0 // pred_check_branch
    %118 = sbr.rel (0) target = $region17
  $region16: #{tpu_custom_call.1} parent=0 // pred_region
    _
  $region17: #{tpu_custom_call.1} parent=0 // pred_fallthru
    _
  // Predicated region
  $region18: #{tpu_custom_call.1} parent=0 // pred_check
    _
  $region19: #{tpu_custom_call.1} parent=0 // pred_check_branch
    %120 = sbr.rel (0) target = $region21
  $region20: #{tpu_custom_call.1} parent=0 // pred_region
    _
  $region21: #{tpu_custom_call.1} parent=0 // pred_fallthru
    _

</llo_original>
